<compile_context>
chip_gen: v5e
topology: v5e:2x2
jax: 0.10.0
libtpu: 0.0.40
codegen_flags: <defaults>
</compile_context>

<pallas_src>
import numpy as np
import jax
import jax.numpy as jnp
from jax.experimental import pallas as pl
from jax.experimental.pallas import tpu as pltpu

# ---- GS layout constants (from the igs repo conventions) --------------------
GS_KEYS = ["xyz", "opacity", "scaling", "rotation"]
GS_CHANNELS = [3, 1, 3, 4]
SH_DEGREE = 3
SHS_CH = (SH_DEGREE + 1) ** 2 * 3          # 48
OUT_CHANNELS = GS_CHANNELS + [SHS_CH]       # [3, 1, 3, 4, 48]
OUT_TOTAL = sum(OUT_CHANNELS)               # 59
OUT_PAD = 128                               # lane-dense padded output width

# Column ranges of each segment in the concatenated output.
_OP_LO, _OP_HI = 3, 4        # opacity  -> sigmoid
_SC_LO, _SC_HI = 4, 7        # scaling  -> exp
_ROT_LO, _ROT_HI = 7, 11     # rotation -> L2 normalize over these 4 cols


def _gs_proj_kernel(x_ref, w_ref, b_ref, o_ref):
    # x_ref: (TM, C)  w_ref: (C, OUT_PAD)  b_ref: (1, OUT_PAD)  o_ref: (TM, OUT_PAD)
    # MXU matmul accumulates in f32 regardless of input dtype; epilogue stays
    # f32 (required on v5e where VPU/EUP have no bf16 path, harmless elsewhere).
    y = jnp.dot(x_ref[...], w_ref[...], preferred_element_type=jnp.float32)
    y = y + b_ref[...]                                   # (TM, OUT_PAD) f32

    # Lane masks built once at (1, OUT_PAD); the selects below broadcast them
    # along sublanes (near-free) instead of materializing (TM, 128) compares.
    col = jax.lax.broadcasted_iota(jnp.int32, (1, OUT_PAD), 1)
    op_mask = (col >= _OP_LO) & (col < _OP_HI)
    sc_mask = (col >= _SC_LO) & (col < _SC_HI)
    rot_mask = (col >= _ROT_LO) & (col < _ROT_HI)
    trans_mask = op_mask | sc_mask

    # rotation: torch.nn.functional.normalize(v) = v / clamp(||v||, 1e-12)
    #         = v * rsqrt(clamp(||v||^2, 1e-24));   one EUP rsqrt, no divide.
    rot_sumsq = jnp.sum(jnp.where(rot_mask, y * y, 0.0), axis=-1, keepdims=True)
    inv_norm = jax.lax.rsqrt(jnp.maximum(rot_sumsq, 1e-24))

    # One fused exp pass over the tile:
    #   opacity lanes: exp(-y)  (feeds sigmoid = 1 / (1 + exp(-y)))
    #   scaling lanes: exp(+y)
    #   other lanes:   exp(0)=1 (discarded by the select below)
    z = jnp.where(op_mask, -y, jnp.where(sc_mask, y, 0.0))
    t = jnp.exp(z)
    sig = pl.reciprocal(1.0 + t, approx=True)            # EUP vrcp, ~free slot
    trans = jnp.where(op_mask, sig, t)                    # exp/sigmoid merged

    y = jnp.where(rot_mask, y * inv_norm, y)               # rotation lanes
    y = jnp.where(trans_mask, trans, y)                    # opacity/scaling lanes
    o_ref[...] = y.astype(o_ref.dtype)


def gs_projection_pallas(x, w_pad, b_pad, *, tm=2048, out_dtype=jnp.bfloat16):
    """Fused GSProjection forward.

    x:      (N, C)        bfloat16 (fast path, default) or float32
    w_pad:  (C, OUT_PAD)  same dtype as x (pre-padded, see make_params)
    b_pad:  (1, OUT_PAD)  float32
    Returns the 128-lane padded output slab (N, OUT_PAD), dtype `out_dtype`
    (bf16 default -> halves the dominant output HBM stream; pass
    out_dtype=jnp.float32 for full-precision xyz/rotation).  Columns
    [:OUT_TOTAL] hold [xyz|opacity|scaling|rotation|shs]; the rest are exact 0.
    Consumers should slice / fuse downstream (no extra HBM pass here).

    tm: row tile. 2048-4096 on v5e/v6e; 4096-8192 on v7x, but keep
    pl.cdiv(N, tm) >= 2 (ideally even) so the parallel grid axis shards across
    both v7x TensorCores.  Sublane granularity: tm % 8 == 0 for f32 x,
    tm % 16 == 0 for bf16 x.
    """
    N, C = x.shape
    assert w_pad.shape == (C, OUT_PAD), w_pad.shape
    assert b_pad.shape == (1, OUT_PAD), b_pad.shape
    assert w_pad.dtype == x.dtype, "x and w_pad must share a dtype (f32 or bf16)"
    sub = 16 if x.dtype == jnp.bfloat16 else 8
    assert tm % sub == 0, f"row tile must be a multiple of {sub} for {x.dtype}"

    grid = (pl.cdiv(N, tm),)  # partial last block: row-local epilogue, OOB stores dropped
    return pl.pallas_call(
        _gs_proj_kernel,
        out_shape=jax.ShapeDtypeStruct((N, OUT_PAD), out_dtype),
        grid_spec=pltpu.PrefetchScalarGridSpec(
            num_scalar_prefetch=0,
            grid=grid,
            in_specs=[
                pl.BlockSpec((tm, C), lambda i: (i, 0)),
                # Constant block index -> weights/bias stay VMEM-resident
                # across the whole grid (no per-step re-DMA).
                pl.BlockSpec((C, OUT_PAD), lambda i: (0, 0)),
                pl.BlockSpec((1, OUT_PAD), lambda i: (0, 0)),
            ],
            out_specs=pl.BlockSpec((tm, OUT_PAD), lambda i: (i, 0)),
        ),
        compiler_params=pltpu.CompilerParams(
            dimension_semantics=("parallel",),
        ),
    )(x, w_pad, b_pad)


def make_params(in_channels=80, init_scaling=-5.0, init_density=0.1, key=None):
    """Build concatenated, pre-padded master (W, b) in f32 at param-build time.

    Biases follow GSProjection.__init__ exactly.  The module zero-inits all
    weights (which would make the matmul trivially zero), so for a meaningful
    kernel test we use small deterministic random weights instead.
    Cast w_pad to bf16 at the call site for the fast path; b_pad stays f32
    (the epilogue is f32).
    """
    if key is None:
        key = jax.random.PRNGKey(0)
    ws, bs = [], []
    for k, ch in zip(GS_KEYS + ["shs"], OUT_CHANNELS):
        key, sub = jax.random.split(key)
        w = 0.02 * jax.random.normal(sub, (in_channels, ch), jnp.float32)
        b = jnp.zeros((ch,), jnp.float32)
        if k == "scaling":
            b = jnp.full((ch,), init_scaling, jnp.float32)
        elif k == "rotation":
            b = jnp.zeros((ch,), jnp.float32).at[0].set(1.0)
        elif k == "opacity":
            inv_sig = float(np.log(init_density / (1.0 - init_density)))
            b = jnp.full((ch,), inv_sig, jnp.float32)
        ws.append(w)
        bs.append(b)
    w_cat = jnp.concatenate(ws, axis=1)     # (C, 59)
    b_cat = jnp.concatenate(bs, axis=0)     # (59,)
    w_pad = jnp.zeros((in_channels, OUT_PAD), jnp.float32).at[:, :OUT_TOTAL].set(w_cat)
    b_pad = jnp.zeros((1, OUT_PAD), jnp.float32).at[0, :OUT_TOTAL].set(b_cat)
    return w_pad, b_pad


def gs_projection_ref(x, w_pad, b_pad):
    """Plain-JAX f32 reference reproducing the PyTorch forward (unpadded, 59 cols)."""
    y = x.astype(jnp.float32) @ w_pad[:, :OUT_TOTAL].astype(jnp.float32) + b_pad[0, :OUT_TOTAL]
    outs, off = [], 0
    for k, ch in zip(GS_KEYS + ["shs"], OUT_CHANNELS):
        v = y[:, off:off + ch]
        if k == "rotation":
            denom = jnp.maximum(jnp.linalg.norm(v, axis=-1, keepdims=True), 1e-12)
            v = v / denom
        elif k == "scaling":
            v = jnp.exp(v)
        elif k == "opacity":
            v = jax.nn.sigmoid(v)
        outs.append(v)
        off += ch
    return jnp.concatenate(outs, axis=-1)


if __name__ == "__main__":
    in_channels = 80
    N = 200   # small, and deliberately NOT a multiple of the tile (partial last block)
    TM = 128  # small-test tile; production default is 2048 (4096-8192 on v7x)

    key = jax.random.PRNGKey(0)
    kx, kp = jax.random.split(key)
    x_f32 = jax.random.normal(kx, (N, in_channels), jnp.float32)
    w_pad_f32, b_pad = make_params(in_channels=in_channels, key=kp)
    ref = np.asarray(gs_projection_ref(x_f32, w_pad_f32, b_pad))

    # ---- Fast path (default): bf16 x / W, bf16 output slab ------------------
    out_bf = jax.block_until_ready(
        gs_projection_pallas(x_f32.astype(jnp.bfloat16),
                             w_pad_f32.astype(jnp.bfloat16),
                             b_pad, tm=TM))
    assert out_bf.shape == (N, OUT_PAD) and out_bf.dtype == jnp.bfloat16
    np.testing.assert_allclose(np.asarray(out_bf, dtype=np.float32)[:, :OUT_TOTAL],
                               ref, rtol=5e-2, atol=2e-2)
    np.testing.assert_array_equal(np.asarray(out_bf, dtype=np.float32)[:, OUT_TOTAL:], 0.0)

    # ---- Precision path: f32 x / W, f32 output -------------------------------
    out_f32 = jax.block_until_ready(
        gs_projection_pallas(x_f32, w_pad_f32, b_pad, tm=TM, out_dtype=jnp.float32))
    assert out_f32.shape == (N, OUT_PAD) and out_f32.dtype == jnp.float32
    got = np.asarray(out_f32)
    # Non-opacity segments are exact-path (identity / exp / rsqrt-normalize).
    cols = np.r_[np.arange(_OP_LO), np.arange(_OP_HI, OUT_TOTAL)]
    np.testing.assert_allclose(got[:, cols], ref[:, cols], rtol=1e-5, atol=1e-5)
    # Opacity uses the EUP approximate reciprocal (pl.reciprocal approx=True);
    # sigmoid outputs are in (0,1) so a small absolute tolerance covers it.
    np.testing.assert_allclose(got[:, _OP_LO:_OP_HI], ref[:, _OP_LO:_OP_HI],
                               rtol=1e-2, atol=1e-2)
    # Padding lanes: zero weights + zero bias on the identity path -> exact 0.
    np.testing.assert_array_equal(got[:, OUT_TOTAL:], 0.0)

    print("KERNEL_OK")
</pallas_src>

<mosaic_0001>
module attributes {stable_mosaic.version = 11 : i64} {
  func.func @_gs_proj_kernel(%arg0: i32, %arg1: memref<128x80xbf16, #tpu.memory_space<vmem>>, %arg2: memref<80x128xbf16, #tpu.memory_space<vmem>>, %arg3: memref<1x128xf32, #tpu.memory_space<vmem>>, %arg4: memref<128x128xbf16, #tpu.memory_space<vmem>>) attributes {dimension_semantics = [#tpu.dimension_semantics<parallel>], iteration_bounds = array<i64: 2>, scalar_prefetch = 0 : i64, scratch_operands = 0 : i64, tpu.core_type = #tpu.core_type<tc>, window_params = [{transform_indices = @transform_0, window_bounds = array<i64: 128, 80>}, {pipeline_mode = #tpu.pipeline_mode<synchronous>, transform_indices = @transform_1, window_bounds = array<i64: 80, 128>}, {pipeline_mode = #tpu.pipeline_mode<synchronous>, transform_indices = @transform_2, window_bounds = array<i64: 1, 128>}, {transform_indices = @transform_3, window_bounds = array<i64: 128, 128>}]} {
    %c0 = arith.constant 0 : index
    %c0_0 = arith.constant 0 : index
    %0 = vector.load %arg1[%c0, %c0_0] : memref<128x80xbf16, #tpu.memory_space<vmem>>, vector<128x80xbf16>
    %c0_1 = arith.constant 0 : index
    %c0_2 = arith.constant 0 : index
    %1 = vector.load %arg2[%c0_1, %c0_2] : memref<80x128xbf16, #tpu.memory_space<vmem>>, vector<80x128xbf16>
    %cst = arith.constant dense<0.000000e+00> : vector<128x128xf32>
    %2 = tpu.matmul %0, %1, %cst {dimension_numbers = #tpu.dot_dimension_numbers<[1], [0], [0], [1], [0, 0, 1, 1], [], []>} : vector<128x80xbf16>, vector<80x128xbf16>, vector<128x128xf32> -> vector<128x128xf32>
    %c0_3 = arith.constant 0 : index
    %c0_4 = arith.constant 0 : index
    %3 = vector.load %arg3[%c0_3, %c0_4] : memref<1x128xf32, #tpu.memory_space<vmem>>, vector<1x128xf32>
    %4 = vector.broadcast %3 : vector<1x128xf32> to vector<128x128xf32>
    %5 = arith.addf %2, %4 : vector<128x128xf32>
    %6 = tpu.iota {dimensions = array<i32: 1>} : vector<1x128xi32>
    %c3_i32 = arith.constant 3 : i32
    %7 = vector.broadcast %c3_i32 : i32 to vector<1x128xi32>
    %8 = arith.cmpi sge, %6, %7 : vector<1x128xi32>
    %c4_i32 = arith.constant 4 : i32
    %9 = vector.broadcast %c4_i32 : i32 to vector<1x128xi32>
    %10 = arith.cmpi slt, %6, %9 : vector<1x128xi32>
    %11 = arith.andi %8, %10 : vector<1x128xi1>
    %c4_i32_5 = arith.constant 4 : i32
    %12 = vector.broadcast %c4_i32_5 : i32 to vector<1x128xi32>
    %13 = arith.cmpi sge, %6, %12 : vector<1x128xi32>
    %c7_i32 = arith.constant 7 : i32
    %14 = vector.broadcast %c7_i32 : i32 to vector<1x128xi32>
    %15 = arith.cmpi slt, %6, %14 : vector<1x128xi32>
    %16 = arith.andi %13, %15 : vector<1x128xi1>
    %c7_i32_6 = arith.constant 7 : i32
    %17 = vector.broadcast %c7_i32_6 : i32 to vector<1x128xi32>
    %18 = arith.cmpi sge, %6, %17 : vector<1x128xi32>
    %c11_i32 = arith.constant 11 : i32
    %19 = vector.broadcast %c11_i32 : i32 to vector<1x128xi32>
    %20 = arith.cmpi slt, %6, %19 : vector<1x128xi32>
    %21 = arith.andi %18, %20 : vector<1x128xi1>
    %22 = arith.ori %11, %16 : vector<1x128xi1>
    %23 = arith.mulf %5, %5 : vector<128x128xf32>
    %cst_7 = arith.constant 0.000000e+00 : f32
    %24 = vector.shape_cast %21 : vector<1x128xi1> to vector<1x128xi1>
    %25 = vector.broadcast %24 : vector<1x128xi1> to vector<128x128xi1>
    %26 = vector.broadcast %cst_7 : f32 to vector<128x128xf32>
    %27 = arith.select %25, %23, %26 : vector<128x128xi1>, vector<128x128xf32>
    %cst_8 = arith.constant dense<0.000000e+00> : vector<128xf32>
    %28 = vector.multi_reduction <add>, %27, %cst_8 [1] : vector<128x128xf32> to vector<128xf32>
    %29 = vector.shape_cast %28 : vector<128xf32> to vector<128x1xf32>
    %cst_9 = arith.constant 1.000000e-24 : f32
    %30 = vector.broadcast %cst_9 : f32 to vector<128x1xf32>
    %31 = arith.maximumf %29, %30 : vector<128x1xf32>
    %32 = math.rsqrt %31 : vector<128x1xf32>
    %cst_10 = arith.constant 0.000000e+00 : f32
    %33 = vector.broadcast %cst_10 : f32 to vector<128x128xf32>
    %34 = arith.subf %33, %5 : vector<128x128xf32>
    %cst_11 = arith.constant 0.000000e+00 : f32
    %35 = vector.shape_cast %16 : vector<1x128xi1> to vector<1x128xi1>
    %36 = vector.broadcast %35 : vector<1x128xi1> to vector<128x128xi1>
    %37 = vector.broadcast %cst_11 : f32 to vector<128x128xf32>
    %38 = arith.select %36, %5, %37 : vector<128x128xi1>, vector<128x128xf32>
    %39 = vector.shape_cast %11 : vector<1x128xi1> to vector<1x128xi1>
    %40 = vector.broadcast %39 : vector<1x128xi1> to vector<128x128xi1>
    %41 = arith.select %40, %34, %38 : vector<128x128xi1>, vector<128x128xf32>
    %42 = math.exp %41 : vector<128x128xf32>
    %cst_12 = arith.constant 1.000000e+00 : f32
    %43 = vector.broadcast %cst_12 : f32 to vector<128x128xf32>
    %44 = arith.addf %43, %42 : vector<128x128xf32>
    %45 = tpu.reciprocal %44 {approx = true} : vector<128x128xf32> -> vector<128x128xf32>
    %46 = vector.shape_cast %11 : vector<1x128xi1> to vector<1x128xi1>
    %47 = vector.broadcast %46 : vector<1x128xi1> to vector<128x128xi1>
    %48 = arith.select %47, %45, %42 : vector<128x128xi1>, vector<128x128xf32>
    %49 = vector.broadcast %32 : vector<128x1xf32> to vector<128x128xf32>
    %50 = arith.mulf %5, %49 : vector<128x128xf32>
    %51 = vector.shape_cast %21 : vector<1x128xi1> to vector<1x128xi1>
    %52 = vector.broadcast %51 : vector<1x128xi1> to vector<128x128xi1>
    %53 = arith.select %52, %50, %5 : vector<128x128xi1>, vector<128x128xf32>
    %54 = vector.shape_cast %22 : vector<1x128xi1> to vector<1x128xi1>
    %55 = vector.broadcast %54 : vector<1x128xi1> to vector<128x128xi1>
    %56 = arith.select %55, %48, %53 : vector<128x128xi1>, vector<128x128xf32>
    %57 = arith.truncf %56 : vector<128x128xf32> to vector<128x128xbf16>
    %c0_13 = arith.constant 0 : index
    %c0_14 = arith.constant 0 : index
    %58 = vector.load %arg4[%c0_13, %c0_14] : memref<128x128xbf16, #tpu.memory_space<vmem>>, vector<128x128xbf16>
    tpu.vector_store %arg4[%c0_13, %c0_14], %57 {strides = array<i32>} : memref<128x128xbf16, #tpu.memory_space<vmem>>, vector<128x128xbf16>,
    return
  }
  func.func @transform_0(%arg0: i32) -> (i32, i32) {
    %c0_i32 = arith.constant 0 : i32
    %c0_i32_0 = arith.constant 0 : i32
    return %arg0, %c0_i32 : i32, i32
  }
  func.func @transform_1(%arg0: i32) -> (i32, i32) {
    %c0_i32 = arith.constant 0 : i32
    %c0_i32_0 = arith.constant 0 : i32
    %c0_i32_1 = arith.constant 0 : i32
    return %c0_i32, %c0_i32_0 : i32, i32
  }
  func.func @transform_2(%arg0: i32) -> (i32, i32) {
    %c0_i32 = arith.constant 0 : i32
    %c0_i32_0 = arith.constant 0 : i32
    %c0_i32_1 = arith.constant 0 : i32
    return %c0_i32, %c0_i32_0 : i32, i32
  }
  func.func @transform_3(%arg0: i32) -> (i32, i32) {
    %c0_i32 = arith.constant 0 : i32
    %c0_i32_0 = arith.constant 0 : i32
    return %arg0, %c0_i32 : i32, i32
  }
}

</mosaic_0001>

<llo_original>
// kernel: tpu_custom_call.1
$region0: #{tpu_custom_call.1}
  #allocation0 [shape = 'u32[]', space=smem, size = 0x4, offset = 0x4, fixed_abs, tag = 'smem constant byte address 0x4 - core index']
  #allocation1 [shape = 'u32[72,128]{1,0:T(1,128)}', space=vmem, size = 0x9000, scoped, tag = 'internal scratch']
  %s0 = inlined_call_operand.vmem [shape: bf16[200,80], index: 0, kind: input, shape index: {}]
  %s1 = inlined_call_operand.vmem [shape: bf16[80,128], index: 1, kind: input, shape index: {}]
  %s2 = inlined_call_operand.vmem [shape: f32[1,128], index: 2, kind: input, shape index: {}]
  %s3 = inlined_call_operand.hbm [shape: bf16[200,128], index: 3, kind: output, shape index: {}]
  %s4 = sld [smem:[#allocation0]]
  $region45: #{tpu_custom_call.1} parent=0
    _
  %s6 = ssub.s32 1, %s4
  %s7 = scalar_select 0, %s6, %s4
  $region1: #{tpu_custom_call.1} parent=0
    #allocation2 [shape = 'u8[65536]{0}', space=vmem, size = 0x10000, scoped, tag = 'output window, operand 0']
    #allocation3 [shape = 's32[2]{0}', space=sflag, size = 0x8, scoped, tag = 'scoped memory for tpu_custom_call.1']
    %8 = vsyncpa [#allocation3], 0
    %s9 = scalar_lea.sflag [#allocation3], 1
    %10 = vsyncpa %s9, 0
    loop: start=0, step=1, limit=4
    $region2: #{tpu_custom_call.1} parent=1 // loop_pre_header
      _
    $region3: #{tpu_custom_call.1} parent=1 // loop_header
      %s12 = sphi 0, %s16
      %p13 = scmp.ge.s32.totalorder %s12, 4
      %s22 = sphi 0, %s24
      %s25 = sphi 0, %s22
      %s26 = sphi 0, %s25
      %s42 = sphi 0, %s26
      %s46 = sphi 0, %s46
      %s48 = sphi 0, %s46
      %s49 = sphi 0, %s48
      %s63 = sphi 0, %s49
      %s67 = sphi 0, %s67
      %s69 = sphi 0, %s67
      %s70 = sphi 0, %s69
      %s84 = sphi 0, %s70
      %s90 = sphi 0, %s92
      %s93 = sphi 0, %s90
      %s94 = sphi 0, %s93
      %s110 = sphi 0, %s94
    $region4: #{tpu_custom_call.1} parent=1 // loop_header_branch
      %15 = sbr.rel (%p13) target = $region8
    $region5: #{tpu_custom_call.1} parent=1 // loop_body
      %s17 = ssub.s32 %s12, 1
      %s18 = ssub.s32 %s12, 2
      %s19 = sadd.s32 %s12, 1
      %s20 = ssub.s32 %s12, %s19
      %p21 = scmp.eq.s32.totalorder %s20, 0
      %s23 = sadd.s32 %s22, 1
      %s24 = scalar_select %p21, %s22, %s23
      %p27 = pneg %p21
      %p28 = scmp.eq.s32.totalorder %s12, 1
      %p29 = por %p27, %p28
      %p30 = scmp.ne.s32.totalorder %s22, %s25
      %p31 = scmp.eq.s32.totalorder %s12, 0
      %p32 = por %p30, %p31
      %p33 = scmp.ne.s32.totalorder %s22, %s25
      %p34 = scmp.eq.s32.totalorder %s17, 1
      %p35 = por %p33, %p34
      %p36 = scmp.ne.s32.totalorder %s25, %s26
      %p37 = scmp.eq.s32.totalorder %s17, 0
      %p38 = por %p36, %p37
      %p39 = scmp.ne.s32.totalorder %s25, %s26
      %p40 = scmp.eq.s32.totalorder %s18, 1
      %p41 = por %p39, %p40
      %p43 = scmp.ne.s32.totalorder %s26, %s42
      %p44 = scmp.eq.s32.totalorder %s18, 0
      %p45 = por %p43, %p44
      %s47 = sadd.s32 %s46, 1
      %p50 = scmp.eq.s32.totalorder %s12, 1
      %p51 = scmp.ne.s32.totalorder %s46, %s48
      %p52 = scmp.eq.s32.totalorder %s12, 0
      %p53 = por %p51, %p52
      %p54 = scmp.ne.s32.totalorder %s46, %s48
      %p55 = scmp.eq.s32.totalorder %s17, 1
      %p56 = por %p54, %p55
      %p57 = scmp.ne.s32.totalorder %s48, %s49
      %p58 = scmp.eq.s32.totalorder %s17, 0
      %p59 = por %p57, %p58
      %p60 = scmp.ne.s32.totalorder %s48, %s49
      %p61 = scmp.eq.s32.totalorder %s18, 1
      %p62 = por %p60, %p61
      %p64 = scmp.ne.s32.totalorder %s49, %s63
      %p65 = scmp.eq.s32.totalorder %s18, 0
      %p66 = por %p64, %p65
      %s68 = sadd.s32 %s67, 1
      %p71 = scmp.eq.s32.totalorder %s12, 1
      %p72 = scmp.ne.s32.totalorder %s67, %s69
      %p73 = scmp.eq.s32.totalorder %s12, 0
      %p74 = por %p72, %p73
      %p75 = scmp.ne.s32.totalorder %s67, %s69
      %p76 = scmp.eq.s32.totalorder %s17, 1
      %p77 = por %p75, %p76
      %p78 = scmp.ne.s32.totalorder %s69, %s70
      %p79 = scmp.eq.s32.totalorder %s17, 0
      %p80 = por %p78, %p79
      %p81 = scmp.ne.s32.totalorder %s69, %s70
      %p82 = scmp.eq.s32.totalorder %s18, 1
      %p83 = por %p81, %p82
      %p85 = scmp.ne.s32.totalorder %s70, %s84
      %p86 = scmp.eq.s32.totalorder %s18, 0
      %p87 = por %p85, %p86
      %s88 = ssub.s32 %s12, %s19
      %p89 = scmp.eq.s32.totalorder %s88, 0
      %s91 = sadd.s32 %s90, 1
      %s92 = scalar_select %p89, %s90, %s91
      %p95 = pneg %p89
      %p96 = scmp.eq.s32.totalorder %s12, 1
      %p97 = por %p95, %p96
      %p98 = scmp.ne.s32.totalorder %s90, %s93
      %p99 = scmp.eq.s32.totalorder %s12, 0
      %p100 = por %p98, %p99
      %p101 = scmp.ne.s32.totalorder %s90, %s93
      %p102 = scmp.eq.s32.totalorder %s17, 1
      %p103 = por %p101, %p102
      %p104 = scmp.ne.s32.totalorder %s93, %s94
      %p105 = scmp.eq.s32.totalorder %s17, 0
      %p106 = por %p104, %p105
      %p107 = scmp.ne.s32.totalorder %s93, %s94
      %p108 = scmp.eq.s32.totalorder %s18, 1
      %p109 = por %p107, %p108
      %p111 = scmp.ne.s32.totalorder %s94, %s110
      %p112 = scmp.eq.s32.totalorder %s18, 0
      %p113 = por %p111, %p112
      %p114 = scmp.le.s32.totalorder 1, %s12
      %p115 = scmp.lt.s32.totalorder %s12, 3
      %p116 = pnand %p114, %p115
      %p117 = pneg %p116
      // Predicated region
      $region9: #{tpu_custom_call.1} parent=5 // pred_check
        _
      $region10: #{tpu_custom_call.1} parent=5 // pred_check_branch
        %119 = sbr.rel (%p116) target = $region12
      $region11: #{tpu_custom_call.1} parent=5 // pred_region
        %s120 = ssub.s32 %s12, 1
        // Predicated region
        $region13: #{tpu_custom_call.1} parent=11 // pred_check
          %p121 = pneg %p59
        $region14: #{tpu_custom_call.1} parent=11 // pred_check_branch
          %123 = sbr.rel (%p121) target = $region16
        $region15: #{tpu_custom_call.1} parent=11 // pred_region
          _
        $region16: #{tpu_custom_call.1} parent=11 // pred_fallthru
          _
        // Predicated region
        $region17: #{tpu_custom_call.1} parent=11 // pred_check
          %p124 = pneg %p80
        $region18: #{tpu_custom_call.1} parent=11 // pred_check_branch
          %126 = sbr.rel (%p124) target = $region20
        $region19: #{tpu_custom_call.1} parent=11 // pred_region
          _
        $region20: #{tpu_custom_call.1} parent=11 // pred_fallthru
          _
      $region12: #{tpu_custom_call.1} parent=5 // pred_fallthru
        _
      %p127 = scmp.lt.s32.totalorder %s12, 2
      // Predicated region
      $region21: #{tpu_custom_call.1} parent=5 // pred_check
        %p128 = pneg %p127
      $region22: #{tpu_custom_call.1} parent=5 // pred_check_branch
        %130 = sbr.rel (%p128) target = $region24
      $region23: #{tpu_custom_call.1} parent=5 // pred_region
        // Predicated region
        $region25: #{tpu_custom_call.1} parent=23 // pred_check
          %p131 = pneg %p32
        $region26: #{tpu_custom_call.1} parent=23 // pred_check_branch
          %133 = sbr.rel (%p131) target = $region28
        $region27: #{tpu_custom_call.1} parent=23 // pred_region
          %s134 = smul.u32 16, %s12
          %s135 = ssub.s32 25, %s134
          %p136 = scmp.lt.s32.totalorder %s135, 16
          %s137 = scalar_select %p136, %s135, 16
          %s138 = smul.u32 4, %s137
          %p139 = scmp.lt.s32.totalorder %s134, 24
          %s140 = scalar_select %p139, %s134, 24
          %s141 = smul.addr %s140, 4
          %s142 = scalar_lea.vmem %s0, %s141
          %s143 = smul.u32 16, %s12
          %s144 = ssub.s32 25, %s143
          %p145 = scmp.lt.s32.totalorder %s144, 16
          %s146 = scalar_select %p145, %s144, 16
          %s147 = smul.u32 4, %s146
        $region28: #{tpu_custom_call.1} parent=23 // pred_fallthru
          _
      $region24: #{tpu_custom_call.1} parent=5 // pred_fallthru
        _
      %p148 = scmp.le.s32.totalorder 1, %s12
      %p149 = scmp.lt.s32.totalorder %s12, 3
      %p150 = pnand %p148, %p149
      %p151 = pneg %p150
      // Predicated region
      $region29: #{tpu_custom_call.1} parent=5 // pred_check
        _
      $region30: #{tpu_custom_call.1} parent=5 // pred_check_branch
        %153 = sbr.rel (%p150) target = $region32
      $region31: #{tpu_custom_call.1} parent=5 // pred_region
        %s154 = ssub.s32 %s12, 1
        %s155 = smul.u32 16, %s17
        %s156 = ssub.s32 25, %s155
        %p157 = scmp.lt.s32.totalorder %s156, 16
        %s158 = scalar_select %p157, %s156, 16
        %s159 = smul.u32 4, %s158
        %p160 = scmp.lt.s32.totalorder %s155, 24
        %s161 = scalar_select %p160, %s155, 24
        %s162 = smul.addr %s161, 4
        %s163 = scalar_lea.vmem %s0, %s162
        %p164 = pneg %p38
        %p165 = pneg %p35
        %p166 = pneg %p59
        %p167 = pneg %p56
        %p168 = pneg %p80
        %p169 = pneg %p77
        %p170 = pneg %p106
        %p171 = pneg %p103
        %s172 = sand.u32 %s93, 1
        %s173 = scalar_lea.sflag [#allocation3], %s172
        %s174 = sand.u32 %s93, 1
        %s175 = smul.addr %s174, 64
        %s176 = scalar_lea.vmem [#allocation2], %s175
        %s177 = smul.u32 16, %s17
        %s178 = ssub.s32 25, %s177
        %p179 = scmp.lt.s32.totalorder %s178, 16
        %s180 = scalar_select %p179, %s178, 16
        %s181 = smul.u32 4, %s180
        %p182 = scmp.lt.s32.totalorder %s177, 24
        %s183 = scalar_select %p182, %s177, 24
        %s184 = smul.addr %s183, 4
        %s185 = scalar_lea.vmem %s0, %s184
        %s186 = smul.u32 16, %s17
        %s187 = ssub.s32 25, %s186
        %p188 = scmp.lt.s32.totalorder %s187, 16
        %s189 = scalar_select %p188, %s187, 16
        %s190 = smul.u32 4, %s189
        %s191 = smul.u32 16, %s17
        %s192 = ssub.s32 25, %s191
        %p193 = scmp.lt.s32.totalorder %s192, 16
        %s194 = scalar_select %p193, %s192, 16
        %s195 = smul.u32 4, %s194
        %v197 = vld [vmem:[%s185] sm:$0xf]
        %v198 = vld [vmem:[%s185 + $0x4] sm:$0xf]
        %v199 = vld [vmem:[%s185 + $0x8] sm:$0xf]
        %v200 = vld [vmem:[%s185 + $0xc] sm:$0xf]
        %v201 = vld [vmem:[%s185 + $0x10] sm:$0xf]
        %v202 = vld [vmem:[%s185 + $0x14] sm:$0xf]
        %v203 = vld [vmem:[%s185 + $0x18] sm:$0xf]
        %v204 = vld [vmem:[%s185 + $0x1c] sm:$0xf]
        %v205 = vld [vmem:[%s185 + $0x20] sm:$0xf]
        %v206 = vld [vmem:[%s185 + $0x24] sm:$0xf]
        %v207 = vld [vmem:[%s185 + $0x28] sm:$0xf]
        %v208 = vld [vmem:[%s185 + $0x2c] sm:$0xf]
        %v209 = vld [vmem:[%s185 + $0x30] sm:$0xf]
        %v210 = vld [vmem:[%s185 + $0x34] sm:$0xf]
        %v211 = vld [vmem:[%s185 + $0x38] sm:$0xf]
        %v212 = vld [vmem:[%s185 + $0x3c] sm:$0xf]
        %v213 = vld [vmem:[%s1] sm:$0xf]
        %v214 = vld [vmem:[%s1 + $0x4] sm:$0xf]
        %v215 = vld [vmem:[%s1 + $0x8] sm:$0xf]
        %v216 = vld [vmem:[%s1 + $0xc] sm:$0xf]
        %v217 = vld [vmem:[%s1 + $0x10] sm:$0xf]
        %v218 = vld [vmem:[%s1 + $0x14] sm:$0xf]
        %v219 = vld [vmem:[%s1 + $0x18] sm:$0xf]
        %v220 = vld [vmem:[%s1 + $0x1c] sm:$0xf]
        %v221 = vld [vmem:[%s1 + $0x20] sm:$0xf]
        %v222 = vld [vmem:[%s1 + $0x24] sm:$0xf]
        %v223 = vld [vmem:[%s2] sm:$0x1]
        %v225 = vperm.slane %v223, 0
        %v243 = vunpack.c.l.b16 %v197
        %v244 = vunpack.c.l.b16 %v198
        %v245 = vunpack.c.l.b16 %v199
        %v246 = vunpack.c.l.b16 %v200
        %v247 = vunpack.c.l.b16 %v201
        %v248 = vunpack.c.l.b16 %v202
        %v249 = vunpack.c.l.b16 %v203
        %v250 = vunpack.c.l.b16 %v204
        %v251 = vunpack.c.l.b16 %v205
        %v252 = vunpack.c.l.b16 %v206
        %v253 = vunpack.c.l.b16 %v207
        %v254 = vunpack.c.l.b16 %v208
        %v255 = vunpack.c.l.b16 %v209
        %v256 = vunpack.c.l.b16 %v210
        %v257 = vunpack.c.l.b16 %v211
        %v258 = vunpack.c.l.b16 %v212
        %v259 = vpack.c.b16 %v244, %v243
        %v260 = vpack.c.b16 %v246, %v245
        %v261 = vpack.c.b16 %v248, %v247
        %v262 = vpack.c.b16 %v250, %v249
        %v263 = vpack.c.b16 %v252, %v251
        %v264 = vpack.c.b16 %v254, %v253
        %v265 = vpack.c.b16 %v256, %v255
        %v266 = vpack.c.b16 %v258, %v257
        %v277 = vunpack.c.l.b16 %v213
        %v278 = vunpack.c.l.b16 %v214
        %v279 = vunpack.c.l.b16 %v215
        %v280 = vunpack.c.l.b16 %v216
        %v281 = vunpack.c.l.b16 %v217
        %v282 = vunpack.c.l.b16 %v218
        %v283 = vunpack.c.l.b16 %v219
        %v284 = vunpack.c.l.b16 %v220
        %v285 = vunpack.c.l.b16 %v221
        %v286 = vunpack.c.l.b16 %v222
        %v287 = vpack.c.b16 %v278, %v277
        %v288 = vpack.c.b16 %v280, %v279
        %v289 = vpack.c.b16 %v282, %v281
        %v290 = vpack.c.b16 %v284, %v283
        %v291 = vpack.c.b16 %v286, %v285
        %vm297 = vcmask 654336
        %v299 = vsel %vm297, %v259, 0
        %v302 = vsel %vm297, %v260, 0
        %v305 = vsel %vm297, %v261, 0
        %v308 = vsel %vm297, %v262, 0
        %v311 = vsel %vm297, %v263, 0
        %v314 = vsel %vm297, %v264, 0
        %v317 = vsel %vm297, %v265, 0
        %v320 = vsel %vm297, %v266, 0
        %322 = vmatpush.bf16.msra.mxu0 0
        %323 = vmatpush.bf16.msra.mxu0 0
        %324 = vmatpush.bf16.msra.mxu0 0
        %325 = vmatpush.bf16.msra.mxu0 %v291
        %326 = vmatpush.bf16.msra.mxu0 %v290
        %327 = vmatpush.bf16.msra.mxu0 %v289
        %328 = vmatpush.bf16.msra.mxu0 %v288
        %329 = vmatpush.bf16.msra.mxu0 %v287
        %330 = vmatmul.bf16.gmra.mxu0 %v299
        %v331 = vpop.f32.mrf.mxu0
        %v332 = vadd.f32 %v225, %v331
        %v333 = vpop.f32.mrf.mxu0
        %v334 = vadd.f32 %v225, %v333
        %335 = vmatmul.bf16.gmra.mxu0 %v302
        %v336 = vpop.f32.mrf.mxu0
        %v337 = vadd.f32 %v225, %v336
        %v338 = vpop.f32.mrf.mxu0
        %v339 = vadd.f32 %v225, %v338
        %340 = vmatmul.bf16.gmra.mxu0 %v305
        %v341 = vpop.f32.mrf.mxu0
        %v342 = vadd.f32 %v225, %v341
        %v343 = vpop.f32.mrf.mxu0
        %v344 = vadd.f32 %v225, %v343
        %345 = vmatmul.bf16.gmra.mxu0 %v308
        %v346 = vpop.f32.mrf.mxu0
        %v347 = vadd.f32 %v225, %v346
        %v348 = vpop.f32.mrf.mxu0
        %v349 = vadd.f32 %v225, %v348
        %350 = vmatmul.bf16.gmra.mxu0 %v311
        %v351 = vpop.f32.mrf.mxu0
        %v352 = vadd.f32 %v225, %v351
        %v353 = vpop.f32.mrf.mxu0
        %v354 = vadd.f32 %v225, %v353
        %355 = vmatmul.bf16.gmra.mxu0 %v314
        %v356 = vpop.f32.mrf.mxu0
        %v357 = vadd.f32 %v225, %v356
        %v358 = vpop.f32.mrf.mxu0
        %v359 = vadd.f32 %v225, %v358
        %360 = vmatmul.bf16.gmra.mxu0 %v317
        %v361 = vpop.f32.mrf.mxu0
        %v362 = vadd.f32 %v225, %v361
        %v363 = vpop.f32.mrf.mxu0
        %v364 = vadd.f32 %v225, %v363
        %365 = vmatmul.bf16.gmra.mxu0 %v320
        %v366 = vpop.f32.mrf.mxu0
        %v367 = vadd.f32 %v225, %v366
        %v368 = vpop.f32.mrf.mxu0
        %v369 = vadd.f32 %v225, %v368
        %370 = vdwg.mxu0
        %v371 = vlaneseq
        %v372 = vand.u32 %v371, 127
        %vm373 = vcmp.ge.s32.totalorder %v372, 3
        %vm374 = vcmp.lt.s32.totalorder %v372, 4
        %vm375 = vmand %vm373, %vm374
        %vm376 = vcmp.ge.s32.totalorder %v372, 4
        %vm377 = vcmp.lt.s32.totalorder %v372, 7
        %vm378 = vmand %vm376, %vm377
        %vm379 = vcmp.ge.s32.totalorder %v372, 7
        %vm380 = vcmp.lt.s32.totalorder %v372, 11
        %vm381 = vmand %vm379, %vm380
        %vm382 = vmor %vm375, %vm378
        %v383 = vmul.f32 %v332, %v332
        %v384 = vmul.f32 %v334, %v334
        %v385 = vmul.f32 %v337, %v337
        %v386 = vmul.f32 %v339, %v339
        %v387 = vmul.f32 %v342, %v342
        %v388 = vmul.f32 %v344, %v344
        %v389 = vmul.f32 %v347, %v347
        %v390 = vmul.f32 %v349, %v349
        %v391 = vmul.f32 %v352, %v352
        %v392 = vmul.f32 %v354, %v354
        %v393 = vmul.f32 %v357, %v357
        %v394 = vmul.f32 %v359, %v359
        %v395 = vmul.f32 %v362, %v362
        %v396 = vmul.f32 %v364, %v364
        %v397 = vmul.f32 %v367, %v367
        %v398 = vmul.f32 %v369, %v369
        %v399 = vsel %vm381, 1, 0
        %vm400 = vcmp.eq.s32.totalorder %v399, 1
        %v401 = vsel %vm400, %v383, 0.0
        %v402 = vsel %vm400, %v384, 0.0
        %v403 = vsel %vm400, %v385, 0.0
        %v404 = vsel %vm400, %v386, 0.0
        %v405 = vsel %vm400, %v387, 0.0
        %v406 = vsel %vm400, %v388, 0.0
        %v407 = vsel %vm400, %v389, 0.0
        %v408 = vsel %vm400, %v390, 0.0
        %v409 = vsel %vm400, %v391, 0.0
        %v410 = vsel %vm400, %v392, 0.0
        %v411 = vsel %vm400, %v393, 0.0
        %v412 = vsel %vm400, %v394, 0.0
        %v413 = vsel %vm400, %v395, 0.0
        %v414 = vsel %vm400, %v396, 0.0
        %v415 = vsel %vm400, %v397, 0.0
        %v416 = vsel %vm400, %v398, 0.0
        %417 = vadd.xlane.f32.xlu0 %v401
        %v418 = vpop.xlane.xlu0 %417
        %419 = vadd.xlane.f32.xlu0 %v402
        %v420 = vpop.xlane.xlu0 %419
        %421 = vadd.xlane.f32.xlu0 %v403
        %v422 = vpop.xlane.xlu0 %421
        %423 = vadd.xlane.f32.xlu0 %v404
        %v424 = vpop.xlane.xlu0 %423
        %425 = vadd.xlane.f32.xlu0 %v405
        %v426 = vpop.xlane.xlu0 %425
        %427 = vadd.xlane.f32.xlu0 %v406
        %v428 = vpop.xlane.xlu0 %427
        %429 = vadd.xlane.f32.xlu0 %v407
        %v430 = vpop.xlane.xlu0 %429
        %431 = vadd.xlane.f32.xlu0 %v408
        %v432 = vpop.xlane.xlu0 %431
        %433 = vadd.xlane.f32.xlu0 %v409
        %v434 = vpop.xlane.xlu0 %433
        %435 = vadd.xlane.f32.xlu0 %v410
        %v436 = vpop.xlane.xlu0 %435
        %437 = vadd.xlane.f32.xlu0 %v411
        %v438 = vpop.xlane.xlu0 %437
        %439 = vadd.xlane.f32.xlu0 %v412
        %v440 = vpop.xlane.xlu0 %439
        %441 = vadd.xlane.f32.xlu0 %v413
        %v442 = vpop.xlane.xlu0 %441
        %443 = vadd.xlane.f32.xlu0 %v414
        %v444 = vpop.xlane.xlu0 %443
        %445 = vadd.xlane.f32.xlu0 %v415
        %v446 = vpop.xlane.xlu0 %445
        %447 = vadd.xlane.f32.xlu0 %v416
        %v448 = vpop.xlane.xlu0 %447
        %v449 = vmax.f32 %v418, 1e-24
        %v450 = vmax.f32 %v420, 1e-24
        %v451 = vmax.f32 %v422, 1e-24
        %v452 = vmax.f32 %v424, 1e-24
        %v453 = vmax.f32 %v426, 1e-24
        %v454 = vmax.f32 %v428, 1e-24
        %v455 = vmax.f32 %v430, 1e-24
        %v456 = vmax.f32 %v432, 1e-24
        %v457 = vmax.f32 %v434, 1e-24
        %v458 = vmax.f32 %v436, 1e-24
        %v459 = vmax.f32 %v438, 1e-24
        %v460 = vmax.f32 %v440, 1e-24
        %v461 = vmax.f32 %v442, 1e-24
        %v462 = vmax.f32 %v444, 1e-24
        %v463 = vmax.f32 %v446, 1e-24
        %v464 = vmax.f32 %v448, 1e-24
        %v465 = vrsqrt.pop %v449
        %v466 = vmul.f32 %v465, %v449
        %v467 = vmul.f32 %v466, %v465
        %v468 = vmul.f32 0.5, %v467
        %v469 = vsub.f32 1.5, %v468
        %v470 = vmul.f32 %v465, %v469
        %vm471 = vweird.f32 %v449
        %vm472 = vweird.f32 %v465
        %vm473 = vmor %vm471, %vm472
        %v474 = vsel %vm473, %v465, %v470
        %v475 = vrsqrt.pop %v450
        %v476 = vmul.f32 %v475, %v450
        %v477 = vmul.f32 %v476, %v475
        %v478 = vmul.f32 0.5, %v477
        %v479 = vsub.f32 1.5, %v478
        %v480 = vmul.f32 %v475, %v479
        %vm481 = vweird.f32 %v450
        %vm482 = vweird.f32 %v475
        %vm483 = vmor %vm481, %vm482
        %v484 = vsel %vm483, %v475, %v480
        %v485 = vrsqrt.pop %v451
        %v486 = vmul.f32 %v485, %v451
        %v487 = vmul.f32 %v486, %v485
        %v488 = vmul.f32 0.5, %v487
        %v489 = vsub.f32 1.5, %v488
        %v490 = vmul.f32 %v485, %v489
        %vm491 = vweird.f32 %v451
        %vm492 = vweird.f32 %v485
        %vm493 = vmor %vm491, %vm492
        %v494 = vsel %vm493, %v485, %v490
        %v495 = vrsqrt.pop %v452
        %v496 = vmul.f32 %v495, %v452
        %v497 = vmul.f32 %v496, %v495
        %v498 = vmul.f32 0.5, %v497
        %v499 = vsub.f32 1.5, %v498
        %v500 = vmul.f32 %v495, %v499
        %vm501 = vweird.f32 %v452
        %vm502 = vweird.f32 %v495
        %vm503 = vmor %vm501, %vm502
        %v504 = vsel %vm503, %v495, %v500
        %v505 = vrsqrt.pop %v453
        %v506 = vmul.f32 %v505, %v453
        %v507 = vmul.f32 %v506, %v505
        %v508 = vmul.f32 0.5, %v507
        %v509 = vsub.f32 1.5, %v508
        %v510 = vmul.f32 %v505, %v509
        %vm511 = vweird.f32 %v453
        %vm512 = vweird.f32 %v505
        %vm513 = vmor %vm511, %vm512
        %v514 = vsel %vm513, %v505, %v510
        %v515 = vrsqrt.pop %v454
        %v516 = vmul.f32 %v515, %v454
        %v517 = vmul.f32 %v516, %v515
        %v518 = vmul.f32 0.5, %v517
        %v519 = vsub.f32 1.5, %v518
        %v520 = vmul.f32 %v515, %v519
        %vm521 = vweird.f32 %v454
        %vm522 = vweird.f32 %v515
        %vm523 = vmor %vm521, %vm522
        %v524 = vsel %vm523, %v515, %v520
        %v525 = vrsqrt.pop %v455
        %v526 = vmul.f32 %v525, %v455
        %v527 = vmul.f32 %v526, %v525
        %v528 = vmul.f32 0.5, %v527
        %v529 = vsub.f32 1.5, %v528
        %v530 = vmul.f32 %v525, %v529
        %vm531 = vweird.f32 %v455
        %vm532 = vweird.f32 %v525
        %vm533 = vmor %vm531, %vm532
        %v534 = vsel %vm533, %v525, %v530
        %v535 = vrsqrt.pop %v456
        %v536 = vmul.f32 %v535, %v456
        %v537 = vmul.f32 %v536, %v535
        %v538 = vmul.f32 0.5, %v537
        %v539 = vsub.f32 1.5, %v538
        %v540 = vmul.f32 %v535, %v539
        %vm541 = vweird.f32 %v456
        %vm542 = vweird.f32 %v535
        %vm543 = vmor %vm541, %vm542
        %v544 = vsel %vm543, %v535, %v540
        %v545 = vrsqrt.pop %v457
        %v546 = vmul.f32 %v545, %v457
        %v547 = vmul.f32 %v546, %v545
        %v548 = vmul.f32 0.5, %v547
        %v549 = vsub.f32 1.5, %v548
        %v550 = vmul.f32 %v545, %v549
        %vm551 = vweird.f32 %v457
        %vm552 = vweird.f32 %v545
        %vm553 = vmor %vm551, %vm552
        %v554 = vsel %vm553, %v545, %v550
        %v555 = vrsqrt.pop %v458
        %v556 = vmul.f32 %v555, %v458
        %v557 = vmul.f32 %v556, %v555
        %v558 = vmul.f32 0.5, %v557
        %v559 = vsub.f32 1.5, %v558
        %v560 = vmul.f32 %v555, %v559
        %vm561 = vweird.f32 %v458
        %vm562 = vweird.f32 %v555
        %vm563 = vmor %vm561, %vm562
        %v564 = vsel %vm563, %v555, %v560
        %v565 = vrsqrt.pop %v459
        %v566 = vmul.f32 %v565, %v459
        %v567 = vmul.f32 %v566, %v565
        %v568 = vmul.f32 0.5, %v567
        %v569 = vsub.f32 1.5, %v568
        %v570 = vmul.f32 %v565, %v569
        %vm571 = vweird.f32 %v459
        %vm572 = vweird.f32 %v565
        %vm573 = vmor %vm571, %vm572
        %v574 = vsel %vm573, %v565, %v570
        %v575 = vrsqrt.pop %v460
        %v576 = vmul.f32 %v575, %v460
        %v577 = vmul.f32 %v576, %v575
        %v578 = vmul.f32 0.5, %v577
        %v579 = vsub.f32 1.5, %v578
        %v580 = vmul.f32 %v575, %v579
        %vm581 = vweird.f32 %v460
        %vm582 = vweird.f32 %v575
        %vm583 = vmor %vm581, %vm582
        %v584 = vsel %vm583, %v575, %v580
        %v585 = vrsqrt.pop %v461
        %v586 = vmul.f32 %v585, %v461
        %v587 = vmul.f32 %v586, %v585
        %v588 = vmul.f32 0.5, %v587
        %v589 = vsub.f32 1.5, %v588
        %v590 = vmul.f32 %v585, %v589
        %vm591 = vweird.f32 %v461
        %vm592 = vweird.f32 %v585
        %vm593 = vmor %vm591, %vm592
        %v594 = vsel %vm593, %v585, %v590
        %v595 = vrsqrt.pop %v462
        %v596 = vmul.f32 %v595, %v462
        %v597 = vmul.f32 %v596, %v595
        %v598 = vmul.f32 0.5, %v597
        %v599 = vsub.f32 1.5, %v598
        %v600 = vmul.f32 %v595, %v599
        %vm601 = vweird.f32 %v462
        %vm602 = vweird.f32 %v595
        %vm603 = vmor %vm601, %vm602
        %v604 = vsel %vm603, %v595, %v600
        %v605 = vrsqrt.pop %v463
        %v606 = vmul.f32 %v605, %v463
        %v607 = vmul.f32 %v606, %v605
        %v608 = vmul.f32 0.5, %v607
        %v609 = vsub.f32 1.5, %v608
        %v610 = vmul.f32 %v605, %v609
        %vm611 = vweird.f32 %v463
        %vm612 = vweird.f32 %v605
        %vm613 = vmor %vm611, %vm612
        %v614 = vsel %vm613, %v605, %v610
        %v615 = vrsqrt.pop %v464
        %v616 = vmul.f32 %v615, %v464
        %v617 = vmul.f32 %v616, %v615
        %v618 = vmul.f32 0.5, %v617
        %v619 = vsub.f32 1.5, %v618
        %v620 = vmul.f32 %v615, %v619
        %vm621 = vweird.f32 %v464
        %vm622 = vweird.f32 %v615
        %vm623 = vmor %vm621, %vm622
        %v624 = vsel %vm623, %v615, %v620
        %v625 = vsub.f32 0.0, %v332
        %v626 = vsub.f32 0.0, %v334
        %v627 = vsub.f32 0.0, %v337
        %v628 = vsub.f32 0.0, %v339
        %v629 = vsub.f32 0.0, %v342
        %v630 = vsub.f32 0.0, %v344
        %v631 = vsub.f32 0.0, %v347
        %v632 = vsub.f32 0.0, %v349
        %v633 = vsub.f32 0.0, %v352
        %v634 = vsub.f32 0.0, %v354
        %v635 = vsub.f32 0.0, %v357
        %v636 = vsub.f32 0.0, %v359
        %v637 = vsub.f32 0.0, %v362
        %v638 = vsub.f32 0.0, %v364
        %v639 = vsub.f32 0.0, %v367
        %v640 = vsub.f32 0.0, %v369
        %v641 = vsel %vm378, 1, 0
        %vm642 = vcmp.eq.s32.totalorder %v641, 1
        %v643 = vsel %vm642, %v332, 0.0
        %v644 = vsel %vm642, %v334, 0.0
        %v645 = vsel %vm642, %v337, 0.0
        %v646 = vsel %vm642, %v339, 0.0
        %v647 = vsel %vm642, %v342, 0.0
        %v648 = vsel %vm642, %v344, 0.0
        %v649 = vsel %vm642, %v347, 0.0
        %v650 = vsel %vm642, %v349, 0.0
        %v651 = vsel %vm642, %v352, 0.0
        %v652 = vsel %vm642, %v354, 0.0
        %v653 = vsel %vm642, %v357, 0.0
        %v654 = vsel %vm642, %v359, 0.0
        %v655 = vsel %vm642, %v362, 0.0
        %v656 = vsel %vm642, %v364, 0.0
        %v657 = vsel %vm642, %v367, 0.0
        %v658 = vsel %vm642, %v369, 0.0
        %v659 = vsel %vm375, 1, 0
        %vm660 = vcmp.eq.s32.totalorder %v659, 1
        %v661 = vsel %vm660, %v625, %v643
        %v662 = vsel %vm660, %v626, %v644
        %v663 = vsel %vm660, %v627, %v645
        %v664 = vsel %vm660, %v628, %v646
        %v665 = vsel %vm660, %v629, %v647
        %v666 = vsel %vm660, %v630, %v648
        %v667 = vsel %vm660, %v631, %v649
        %v668 = vsel %vm660, %v632, %v650
        %v669 = vsel %vm660, %v633, %v651
        %v670 = vsel %vm660, %v634, %v652
        %v671 = vsel %vm660, %v635, %v653
        %v672 = vsel %vm660, %v636, %v654
        %v673 = vsel %vm660, %v637, %v655
        %v674 = vsel %vm660, %v638, %v656
        %v675 = vsel %vm660, %v639, %v657
        %v676 = vsel %vm660, %v640, %v658
        %v677 = vmul.f32 %v661, 1.442695
        %v678 = vpow.pop %v677
        %v679 = vmul.f32 %v662, 1.442695
        %v680 = vpow.pop %v679
        %v681 = vmul.f32 %v663, 1.442695
        %v682 = vpow.pop %v681
        %v683 = vmul.f32 %v664, 1.442695
        %v684 = vpow.pop %v683
        %v685 = vmul.f32 %v665, 1.442695
        %v686 = vpow.pop %v685
        %v687 = vmul.f32 %v666, 1.442695
        %v688 = vpow.pop %v687
        %v689 = vmul.f32 %v667, 1.442695
        %v690 = vpow.pop %v689
        %v691 = vmul.f32 %v668, 1.442695
        %v692 = vpow.pop %v691
        %v693 = vmul.f32 %v669, 1.442695
        %v694 = vpow.pop %v693
        %v695 = vmul.f32 %v670, 1.442695
        %v696 = vpow.pop %v695
        %v697 = vmul.f32 %v671, 1.442695
        %v698 = vpow.pop %v697
        %v699 = vmul.f32 %v672, 1.442695
        %v700 = vpow.pop %v699
        %v701 = vmul.f32 %v673, 1.442695
        %v702 = vpow.pop %v701
        %v703 = vmul.f32 %v674, 1.442695
        %v704 = vpow.pop %v703
        %v705 = vmul.f32 %v675, 1.442695
        %v706 = vpow.pop %v705
        %v707 = vmul.f32 %v676, 1.442695
        %v708 = vpow.pop %v707
        %v709 = vadd.f32 %v678, 1.0
        %v710 = vadd.f32 %v680, 1.0
        %v711 = vadd.f32 %v682, 1.0
        %v712 = vadd.f32 %v684, 1.0
        %v713 = vadd.f32 %v686, 1.0
        %v714 = vadd.f32 %v688, 1.0
        %v715 = vadd.f32 %v690, 1.0
        %v716 = vadd.f32 %v692, 1.0
        %v717 = vadd.f32 %v694, 1.0
        %v718 = vadd.f32 %v696, 1.0
        %v719 = vadd.f32 %v698, 1.0
        %v720 = vadd.f32 %v700, 1.0
        %v721 = vadd.f32 %v702, 1.0
        %v722 = vadd.f32 %v704, 1.0
        %v723 = vadd.f32 %v706, 1.0
        %v724 = vadd.f32 %v708, 1.0
        %v725 = vrcp.pop %v709
        %v726 = vrcp.pop %v710
        %v727 = vrcp.pop %v711
        %v728 = vrcp.pop %v712
        %v729 = vrcp.pop %v713
        %v730 = vrcp.pop %v714
        %v731 = vrcp.pop %v715
        %v732 = vrcp.pop %v716
        %v733 = vrcp.pop %v717
        %v734 = vrcp.pop %v718
        %v735 = vrcp.pop %v719
        %v736 = vrcp.pop %v720
        %v737 = vrcp.pop %v721
        %v738 = vrcp.pop %v722
        %v739 = vrcp.pop %v723
        %v740 = vrcp.pop %v724
        %v741 = vsel %vm660, %v725, %v678
        %v742 = vsel %vm660, %v726, %v680
        %v743 = vsel %vm660, %v727, %v682
        %v744 = vsel %vm660, %v728, %v684
        %v745 = vsel %vm660, %v729, %v686
        %v746 = vsel %vm660, %v730, %v688
        %v747 = vsel %vm660, %v731, %v690
        %v748 = vsel %vm660, %v732, %v692
        %v749 = vsel %vm660, %v733, %v694
        %v750 = vsel %vm660, %v734, %v696
        %v751 = vsel %vm660, %v735, %v698
        %v752 = vsel %vm660, %v736, %v700
        %v753 = vsel %vm660, %v737, %v702
        %v754 = vsel %vm660, %v738, %v704
        %v755 = vsel %vm660, %v739, %v706
        %v756 = vsel %vm660, %v740, %v708
        %v757 = vmul.f32 %v332, %v474
        %v758 = vmul.f32 %v334, %v484
        %v759 = vmul.f32 %v337, %v494
        %v760 = vmul.f32 %v339, %v504
        %v761 = vmul.f32 %v342, %v514
        %v762 = vmul.f32 %v344, %v524
        %v763 = vmul.f32 %v347, %v534
        %v764 = vmul.f32 %v349, %v544
        %v765 = vmul.f32 %v352, %v554
        %v766 = vmul.f32 %v354, %v564
        %v767 = vmul.f32 %v357, %v574
        %v768 = vmul.f32 %v359, %v584
        %v769 = vmul.f32 %v362, %v594
        %v770 = vmul.f32 %v364, %v604
        %v771 = vmul.f32 %v367, %v614
        %v772 = vmul.f32 %v369, %v624
        %v773 = vsel %vm400, %v757, %v332
        %v774 = vsel %vm400, %v758, %v334
        %v775 = vsel %vm400, %v759, %v337
        %v776 = vsel %vm400, %v760, %v339
        %v777 = vsel %vm400, %v761, %v342
        %v778 = vsel %vm400, %v762, %v344
        %v779 = vsel %vm400, %v763, %v347
        %v780 = vsel %vm400, %v764, %v349
        %v781 = vsel %vm400, %v765, %v352
        %v782 = vsel %vm400, %v766, %v354
        %v783 = vsel %vm400, %v767, %v357
        %v784 = vsel %vm400, %v768, %v359
        %v785 = vsel %vm400, %v769, %v362
        %v786 = vsel %vm400, %v770, %v364
        %v787 = vsel %vm400, %v771, %v367
        %v788 = vsel %vm400, %v772, %v369
        %v789 = vsel %vm382, 1, 0
        %vm790 = vcmp.eq.s32.totalorder %v789, 1
        %v791 = vsel %vm790, %v741, %v773
        %v792 = vsel %vm790, %v742, %v774
        %v793 = vsel %vm790, %v743, %v775
        %v794 = vsel %vm790, %v744, %v776
        %v795 = vsel %vm790, %v745, %v777
        %v796 = vsel %vm790, %v746, %v778
        %v797 = vsel %vm790, %v747, %v779
        %v798 = vsel %vm790, %v748, %v780
        %v799 = vsel %vm790, %v749, %v781
        %v800 = vsel %vm790, %v750, %v782
        %v801 = vsel %vm790, %v751, %v783
        %v802 = vsel %vm790, %v752, %v784
        %v803 = vsel %vm790, %v753, %v785
        %v804 = vsel %vm790, %v754, %v786
        %v805 = vsel %vm790, %v755, %v787
        %v806 = vsel %vm790, %v756, %v788
        %v807 = vpack.c.bf16 %v791, %v791
        %v808 = vpack.c.bf16 %v792, %v792
        %v809 = vpack.c.bf16 %v793, %v793
        %v810 = vpack.c.bf16 %v794, %v794
        %v811 = vpack.c.bf16 %v795, %v795
        %v812 = vpack.c.bf16 %v796, %v796
        %v813 = vpack.c.bf16 %v797, %v797
        %v814 = vpack.c.bf16 %v798, %v798
        %v815 = vpack.c.bf16 %v799, %v799
        %v816 = vpack.c.bf16 %v800, %v800
        %v817 = vpack.c.bf16 %v801, %v801
        %v818 = vpack.c.bf16 %v802, %v802
        %v819 = vpack.c.bf16 %v803, %v803
        %v820 = vpack.c.bf16 %v804, %v804
        %v821 = vpack.c.bf16 %v805, %v805
        %v822 = vpack.c.bf16 %v806, %v806
        %823 = vst [vmem:[%s176] sm:$0xf] %v807
        %824 = vst [vmem:[%s176 + $0x4] sm:$0xf] %v808
        %825 = vst [vmem:[%s176 + $0x8] sm:$0xf] %v809
        %826 = vst [vmem:[%s176 + $0xc] sm:$0xf] %v810
        %827 = vst [vmem:[%s176 + $0x10] sm:$0xf] %v811
        %828 = vst [vmem:[%s176 + $0x14] sm:$0xf] %v812
        %829 = vst [vmem:[%s176 + $0x18] sm:$0xf] %v813
        %830 = vst [vmem:[%s176 + $0x1c] sm:$0xf] %v814
        %831 = vst [vmem:[%s176 + $0x20] sm:$0xf] %v815
        %832 = vst [vmem:[%s176 + $0x24] sm:$0xf] %v816
        %833 = vst [vmem:[%s176 + $0x28] sm:$0xf] %v817
        %834 = vst [vmem:[%s176 + $0x2c] sm:$0xf] %v818
        %835 = vst [vmem:[%s176 + $0x30] sm:$0xf] %v819
        %836 = vst [vmem:[%s176 + $0x34] sm:$0xf] %v820
        %837 = vst [vmem:[%s176 + $0x38] sm:$0xf] %v821
        %838 = vst [vmem:[%s176 + $0x3c] sm:$0xf] %v822
        %s839 = sand.u32 %s93, 1
        %s840 = scalar_lea.sflag [#allocation3], %s839
        %s841 = sand.u32 %s93, 1
        %s842 = smul.addr %s841, 64
        %s843 = scalar_lea.vmem [#allocation2], %s842
        // Predicated region
        $region33: #{tpu_custom_call.1} parent=31 // pred_check
          %p844 = pneg %p103
        $region34: #{tpu_custom_call.1} parent=31 // pred_check_branch
          %846 = sbr.rel (%p844) target = $region36
        $region35: #{tpu_custom_call.1} parent=31 // pred_region
          %s847 = smul.u32 16, %s17
          %s848 = ssub.s32 25, %s847
          %p849 = scmp.lt.s32.totalorder %s848, 16
          %s850 = scalar_select %p849, %s848, 16
          %s851 = smul.u32 4, %s850
          %s852 = ssub.s32 64, %s851
          %s853 = sshll.u32 %s852, 4
          %854 = vsyncadd %s840, %s853
          %p855 = scmp.ne.s32.totalorder 0, %s851
          %s856 = smul.addr %s847, 4
          %s857 = scalar_lea.hbm %s3, %s856
          %s858 = smul.u32 4, %s850
          %s859 = sshll.u32 %s843, 4
          %s860 = int_to_ptr.vmem [resolvable:$true] %s859
          %s861 = sshll.u32 %s857, 4
          %s862 = int_to_ptr.hbm [resolvable:$true] %s861
          %s863 = sshll.u32 %s858, 4
          %867 = dma.vmem_to_hbm [thread:$0]  (%p855), %s860, %s863, %s862, %s840, 64, 64, 4
        $region36: #{tpu_custom_call.1} parent=31 // pred_fallthru
          _
      $region32: #{tpu_custom_call.1} parent=5 // pred_fallthru
        _
      %p868 = scmp.le.s32.totalorder 2, %s12
      // Predicated region
      $region37: #{tpu_custom_call.1} parent=5 // pred_check
        %p869 = pneg %p868
      $region38: #{tpu_custom_call.1} parent=5 // pred_check_branch
        %871 = sbr.rel (%p869) target = $region40
      $region39: #{tpu_custom_call.1} parent=5 // pred_region
        %s872 = ssub.s32 %s12, 2
        // Predicated region
        $region41: #{tpu_custom_call.1} parent=39 // pred_check
          %p873 = pneg %p109
        $region42: #{tpu_custom_call.1} parent=39 // pred_check_branch
          %875 = sbr.rel (%p873) target = $region44
        $region43: #{tpu_custom_call.1} parent=39 // pred_region
          %s876 = sand.u32 %s94, 1
          %s877 = scalar_lea.sflag [#allocation3], %s876
          %s878 = sand.u32 %s94, 1
          %s879 = smul.addr %s878, 64
          %s880 = scalar_lea.vmem [#allocation2], %s879
          %882 = dma.done %s877, 1024
        $region44: #{tpu_custom_call.1} parent=39 // pred_fallthru
          _
      $region40: #{tpu_custom_call.1} parent=5 // pred_fallthru
        _
    $region6: #{tpu_custom_call.1} parent=1 // loop_footer
      %s16 = sadd.s32 1, %s12
    $region7: #{tpu_custom_call.1} parent=1 // loop_footer_branch
      %11 = sbr.rel target = $region3
    $region8: #{tpu_custom_call.1} parent=1 // loop_exit
      _
    %883 = vsyncpa [#allocation3], 1
    %s884 = scalar_lea.sflag [#allocation3], 1
    %885 = vsyncpa %s884, 1

</llo_original>
